<compile_context>
chip_gen: v6e
topology: v6e:2x2x1
jax: 0.10.0
libtpu: 0.0.40
codegen_flags: <defaults>
</compile_context>

<pallas_src>
import jax
import jax.numpy as jnp
from jax.experimental import pallas as pl
from jax.experimental.pallas import tpu as pltpu


def trend_kernel(bp_ref, delta_ref, dxb_ref, wb0_ref, t_ref, o_ref):
    # bp_ref    : SMEM (n_bp,)  breakpoints (sorted ascending)
    # delta_ref : SMEM (n_bp,)  slope deltas
    # dxb_ref   : SMEM (n_bp,)  precomputed delta_j * bp_j
    # wb0_ref   : SMEM (2,)     [w0, b0] from the init Linear(1, 1)
    # t_ref     : VMEM (TM, LANES) tile of time points
    # o_ref     : VMEM (TM, LANES) tile of outputs
    t = t_ref[...]
    w = jnp.full(t.shape, wb0_ref[0], dtype=jnp.float32)
    b = jnp.full(t.shape, wb0_ref[1], dtype=jnp.float32)
    for j in range(bp_ref.shape[0]):  # static unroll; number of breakpoints is tiny
        active = t >= bp_ref[j]
        w = w + jnp.where(active, delta_ref[j], 0.0)
        b = b - jnp.where(active, dxb_ref[j], 0.0)
    o_ref[...] = t * w + b


def compute_wb(w0, b0, deltas, bpoints):
    """Sequential recurrence from Trend.__copy2array (tiny; plain-JAX glue, used for reference)."""
    ws = [w0]
    bs = [b0]
    w, b = w0, b0
    for i in range(bpoints.shape[0]):
        x1 = bpoints[i]
        y1 = w * x1 + b
        w = w + deltas[i]
        b = y1 - w * x1
        ws.append(w)
        bs.append(b)
    return jnp.stack([jnp.stack(ws), jnp.stack(bs)], axis=1)  # (n_seg, 2)


def trend_forward(t, bpoints, deltas, w0, b0, *, lanes=512, max_tile_rows=1024):
    """t: (N, 1) float32 column vector (PyTorch layout). Returns (N, 1) float32."""
    n = t.shape[0]

    # Tiny scalar tables (host-side prep, all O(n_breakpoints)).
    bpoints = bpoints.astype(jnp.float32)
    deltas = deltas.astype(jnp.float32)
    dxb = deltas * bpoints
    wb0 = jnp.stack([jnp.asarray(w0, jnp.float32).reshape(()),
                     jnp.asarray(b0, jnp.float32).reshape(())])

    # Lane-dense slab. Pad only to a multiple of `lanes` (skipped when already aligned).
    t_flat = t.reshape(-1).astype(jnp.float32)
    pad = (-n) % lanes
    if pad:
        t_flat = jnp.pad(t_flat, (0, pad))
    rows = t_flat.shape[0] // lanes
    t2 = t_flat.reshape(rows, lanes)

    if rows <= max_tile_rows:
        # Small input: one big block (block_shape == full array dims), single grid step.
        tile_rows, grid = rows, (1,)
    else:
        # Large input: 1024x512 f32 tiles (2 MiB/buffer, double-buffered in+out fits
        # comfortably in scoped VMEM on v5e/v6e/v7x). Partial final block is masked by Pallas.
        tile_rows, grid = max_tile_rows, (pl.cdiv(rows, max_tile_rows),)

    out2 = pl.pallas_call(
        trend_kernel,
        out_shape=jax.ShapeDtypeStruct((rows, lanes), jnp.float32),
        grid=grid,
        in_specs=[
            pl.BlockSpec(memory_space=pltpu.MemorySpace.SMEM),   # breakpoints
            pl.BlockSpec(memory_space=pltpu.MemorySpace.SMEM),   # deltas
            pl.BlockSpec(memory_space=pltpu.MemorySpace.SMEM),   # deltas * breakpoints
            pl.BlockSpec(memory_space=pltpu.MemorySpace.SMEM),   # [w0, b0]
            pl.BlockSpec((tile_rows, lanes), lambda i: (i, 0)),  # t tile
        ],
        out_specs=pl.BlockSpec((tile_rows, lanes), lambda i: (i, 0)),
        compiler_params=pltpu.CompilerParams(
            dimension_semantics=("parallel",)),                  # megacore sharding on v7x
    )(bpoints, deltas, dxb, wb0, t2)

    return out2.reshape(-1)[:n].reshape(n, 1)


# TODO(synk): the breakpoints=None branch of the module is a plain nn.Linear(1, 1);
# it is not exercised here (the kernel implements the piecewise-trend branch).


if __name__ == "__main__":
    key = jax.random.PRNGKey(0)
    k1, k2, k3, k4 = jax.random.split(key, 4)

    # Module config: breakpoints=4 (int), moment['t_range'] = (0., 10.)
    n_breaks = 4
    t_range = (0.0, 10.0)
    bpoints = jnp.linspace(t_range[0], t_range[1], n_breaks + 1,
                           endpoint=False, dtype=jnp.float32)[1:]   # (4,)

    # nn.Linear(1, 1) weight/bias and deltas parameter (deterministic synthetic init)
    w0 = jax.random.normal(k1, (), dtype=jnp.float32) * 0.5
    b0 = jax.random.normal(k2, (), dtype=jnp.float32) * 0.5
    deltas = jax.random.normal(k3, (n_breaks,), dtype=jnp.float32) * 0.3

    # Input t: column vector of time points, as the module's forward expects.
    N = 2048
    t = jax.random.uniform(k4, (N, 1), minval=t_range[0], maxval=t_range[1],
                           dtype=jnp.float32)

    out = jax.block_until_ready(trend_forward(t, bpoints, deltas, w0, b0))

    # Pure-JAX reference mirroring the torch forward exactly.
    wb = compute_wb(w0, b0, deltas, bpoints)            # (n_breaks + 1, 2)
    seg = (t >= bpoints[None, :]).sum(axis=1)           # (N,)
    ref = t * wb[seg][:, :1] + wb[seg][:, 1:]           # (N, 1)

    assert out.shape == (N, 1)
    assert jnp.allclose(out, ref, atol=1e-5, rtol=1e-5)
    print("KERNEL_OK")
</pallas_src>

<mosaic_0001>
module attributes {stable_mosaic.version = 11 : i64} {
  func.func @trend_kernel(%arg0: i32, %arg1: memref<4xf32, #tpu.memory_space<smem>>, %arg2: memref<4xf32, #tpu.memory_space<smem>>, %arg3: memref<4xf32, #tpu.memory_space<smem>>, %arg4: memref<2xf32, #tpu.memory_space<smem>>, %arg5: memref<4x512xf32, #tpu.memory_space<vmem>>, %arg6: memref<4x512xf32, #tpu.memory_space<vmem>>) attributes {dimension_semantics = [#tpu.dimension_semantics<parallel>], iteration_bounds = array<i64: 1>, scalar_prefetch = 0 : i64, scratch_operands = 0 : i64, tpu.core_type = #tpu.core_type<tc>, window_params = [{transform_indices = @transform_0, window_bounds = array<i64: 4>}, {transform_indices = @transform_1, window_bounds = array<i64: 4>}, {transform_indices = @transform_2, window_bounds = array<i64: 4>}, {transform_indices = @transform_3, window_bounds = array<i64: 2>}, {transform_indices = @transform_4, window_bounds = array<i64: 4, 512>}, {transform_indices = @transform_5, window_bounds = array<i64: 4, 512>}]} {
    %c0 = arith.constant 0 : index
    %c0_0 = arith.constant 0 : index
    %0 = vector.load %arg5[%c0, %c0_0] : memref<4x512xf32, #tpu.memory_space<vmem>>, vector<4x512xf32>
    %c0_1 = arith.constant 0 : index
    %1 = memref.load %arg4[%c0_1] : memref<2xf32, #tpu.memory_space<smem>>
    %2 = vector.broadcast %1 : f32 to vector<4x512xf32>
    %c1 = arith.constant 1 : index
    %3 = memref.load %arg4[%c1] : memref<2xf32, #tpu.memory_space<smem>>
    %4 = vector.broadcast %3 : f32 to vector<4x512xf32>
    %c0_2 = arith.constant 0 : index
    %5 = memref.load %arg1[%c0_2] : memref<4xf32, #tpu.memory_space<smem>>
    %6 = vector.broadcast %5 : f32 to vector<4x512xf32>
    %7 = arith.cmpf oge, %0, %6 : vector<4x512xf32>
    %c0_3 = arith.constant 0 : index
    %8 = memref.load %arg2[%c0_3] : memref<4xf32, #tpu.memory_space<smem>>
    %cst = arith.constant 0.000000e+00 : f32
    %9 = vector.broadcast %8 : f32 to vector<4x512xf32>
    %10 = vector.broadcast %cst : f32 to vector<4x512xf32>
    %11 = arith.select %7, %9, %10 : vector<4x512xi1>, vector<4x512xf32>
    %12 = arith.addf %2, %11 : vector<4x512xf32>
    %c0_4 = arith.constant 0 : index
    %13 = memref.load %arg3[%c0_4] : memref<4xf32, #tpu.memory_space<smem>>
    %cst_5 = arith.constant 0.000000e+00 : f32
    %14 = vector.broadcast %13 : f32 to vector<4x512xf32>
    %15 = vector.broadcast %cst_5 : f32 to vector<4x512xf32>
    %16 = arith.select %7, %14, %15 : vector<4x512xi1>, vector<4x512xf32>
    %17 = arith.subf %4, %16 : vector<4x512xf32>
    %c1_6 = arith.constant 1 : index
    %18 = memref.load %arg1[%c1_6] : memref<4xf32, #tpu.memory_space<smem>>
    %19 = vector.broadcast %18 : f32 to vector<4x512xf32>
    %20 = arith.cmpf oge, %0, %19 : vector<4x512xf32>
    %c1_7 = arith.constant 1 : index
    %21 = memref.load %arg2[%c1_7] : memref<4xf32, #tpu.memory_space<smem>>
    %cst_8 = arith.constant 0.000000e+00 : f32
    %22 = vector.broadcast %21 : f32 to vector<4x512xf32>
    %23 = vector.broadcast %cst_8 : f32 to vector<4x512xf32>
    %24 = arith.select %20, %22, %23 : vector<4x512xi1>, vector<4x512xf32>
    %25 = arith.addf %12, %24 : vector<4x512xf32>
    %c1_9 = arith.constant 1 : index
    %26 = memref.load %arg3[%c1_9] : memref<4xf32, #tpu.memory_space<smem>>
    %cst_10 = arith.constant 0.000000e+00 : f32
    %27 = vector.broadcast %26 : f32 to vector<4x512xf32>
    %28 = vector.broadcast %cst_10 : f32 to vector<4x512xf32>
    %29 = arith.select %20, %27, %28 : vector<4x512xi1>, vector<4x512xf32>
    %30 = arith.subf %17, %29 : vector<4x512xf32>
    %c2 = arith.constant 2 : index
    %31 = memref.load %arg1[%c2] : memref<4xf32, #tpu.memory_space<smem>>
    %32 = vector.broadcast %31 : f32 to vector<4x512xf32>
    %33 = arith.cmpf oge, %0, %32 : vector<4x512xf32>
    %c2_11 = arith.constant 2 : index
    %34 = memref.load %arg2[%c2_11] : memref<4xf32, #tpu.memory_space<smem>>
    %cst_12 = arith.constant 0.000000e+00 : f32
    %35 = vector.broadcast %34 : f32 to vector<4x512xf32>
    %36 = vector.broadcast %cst_12 : f32 to vector<4x512xf32>
    %37 = arith.select %33, %35, %36 : vector<4x512xi1>, vector<4x512xf32>
    %38 = arith.addf %25, %37 : vector<4x512xf32>
    %c2_13 = arith.constant 2 : index
    %39 = memref.load %arg3[%c2_13] : memref<4xf32, #tpu.memory_space<smem>>
    %cst_14 = arith.constant 0.000000e+00 : f32
    %40 = vector.broadcast %39 : f32 to vector<4x512xf32>
    %41 = vector.broadcast %cst_14 : f32 to vector<4x512xf32>
    %42 = arith.select %33, %40, %41 : vector<4x512xi1>, vector<4x512xf32>
    %43 = arith.subf %30, %42 : vector<4x512xf32>
    %c3 = arith.constant 3 : index
    %44 = memref.load %arg1[%c3] : memref<4xf32, #tpu.memory_space<smem>>
    %45 = vector.broadcast %44 : f32 to vector<4x512xf32>
    %46 = arith.cmpf oge, %0, %45 : vector<4x512xf32>
    %c3_15 = arith.constant 3 : index
    %47 = memref.load %arg2[%c3_15] : memref<4xf32, #tpu.memory_space<smem>>
    %cst_16 = arith.constant 0.000000e+00 : f32
    %48 = vector.broadcast %47 : f32 to vector<4x512xf32>
    %49 = vector.broadcast %cst_16 : f32 to vector<4x512xf32>
    %50 = arith.select %46, %48, %49 : vector<4x512xi1>, vector<4x512xf32>
    %51 = arith.addf %38, %50 : vector<4x512xf32>
    %c3_17 = arith.constant 3 : index
    %52 = memref.load %arg3[%c3_17] : memref<4xf32, #tpu.memory_space<smem>>
    %cst_18 = arith.constant 0.000000e+00 : f32
    %53 = vector.broadcast %52 : f32 to vector<4x512xf32>
    %54 = vector.broadcast %cst_18 : f32 to vector<4x512xf32>
    %55 = arith.select %46, %53, %54 : vector<4x512xi1>, vector<4x512xf32>
    %56 = arith.subf %43, %55 : vector<4x512xf32>
    %57 = arith.mulf %0, %51 : vector<4x512xf32>
    %58 = arith.addf %57, %56 : vector<4x512xf32>
    %c0_19 = arith.constant 0 : index
    %c0_20 = arith.constant 0 : index
    %59 = vector.load %arg6[%c0_19, %c0_20] : memref<4x512xf32, #tpu.memory_space<vmem>>, vector<4x512xf32>
    tpu.vector_store %arg6[%c0_19, %c0_20], %58 {strides = array<i32>} : memref<4x512xf32, #tpu.memory_space<vmem>>, vector<4x512xf32>,
    return
  }
  func.func @transform_0(%arg0: i32) -> i32 {
    %c0_i32 = arith.constant 0 : i32
    %c0_i32_0 = arith.constant 0 : i32
    return %c0_i32 : i32
  }
  func.func @transform_1(%arg0: i32) -> i32 {
    %c0_i32 = arith.constant 0 : i32
    %c0_i32_0 = arith.constant 0 : i32
    return %c0_i32 : i32
  }
  func.func @transform_2(%arg0: i32) -> i32 {
    %c0_i32 = arith.constant 0 : i32
    %c0_i32_0 = arith.constant 0 : i32
    return %c0_i32 : i32
  }
  func.func @transform_3(%arg0: i32) -> i32 {
    %c0_i32 = arith.constant 0 : i32
    %c0_i32_0 = arith.constant 0 : i32
    return %c0_i32 : i32
  }
  func.func @transform_4(%arg0: i32) -> (i32, i32) {
    %c0_i32 = arith.constant 0 : i32
    %c0_i32_0 = arith.constant 0 : i32
    return %arg0, %c0_i32 : i32, i32
  }
  func.func @transform_5(%arg0: i32) -> (i32, i32) {
    %c0_i32 = arith.constant 0 : i32
    %c0_i32_0 = arith.constant 0 : i32
    return %arg0, %c0_i32 : i32, i32
  }
}

</mosaic_0001>

<llo_original>
// kernel: tpu_custom_call.1
$region0: #{tpu_custom_call.1}
  #allocation0 [shape = 'u32[]', space=smem, size = 0x4, offset = 0x4, fixed_abs, tag = 'smem constant byte address 0x4 - core index']
  #allocation1 [shape = 'u32[144,128]{1,0:T(1,128)}', space=vmem, size = 0x12000, scoped, tag = 'internal scratch']
  %s0 = inlined_call_operand.hbm [shape: f32[4], index: 0, kind: input, shape index: {}]
  %s1 = inlined_call_operand.vmem [shape: f32[4], index: 1, kind: input, shape index: {}]
  %s2 = inlined_call_operand.vmem [shape: f32[4], index: 2, kind: input, shape index: {}]
  %s3 = inlined_call_operand.vmem [shape: f32[2], index: 3, kind: input, shape index: {}]
  %s4 = inlined_call_operand.hbm [shape: f32[4,512], index: 4, kind: input, shape index: {}]
  %s5 = inlined_call_operand.hbm [shape: f32[4,512], index: 5, kind: output, shape index: {}]
  %s6 = sld [smem:[#allocation0]]
  $region50: #{tpu_custom_call.1} parent=0
    _
  %s8 = ssub.s32 1, %s6
  %s9 = scalar_select 0, %s8, %s6
  $region1: #{tpu_custom_call.1} parent=0
    #allocation2 [shape = 'u8[512]{0}', space=smem, size = 0x200, scoped, tag = 'input window, operand 0, single buffered']
    #allocation3 [shape = 's32[1]{0}', space=sflag, size = 0x4, scoped, tag = 'scoped memory for tpu_custom_call.1']
    #allocation4 [shape = 's32[1]{0}', space=sflag, size = 0x4, scoped, tag = 'scoped memory for tpu_custom_call.1']
    #allocation5 [shape = 's32[1]{0}', space=sflag, size = 0x4, scoped, tag = 'scoped memory for tpu_custom_call.1']
    #allocation6 [shape = 's32[1]{0}', space=sflag, size = 0x4, scoped, tag = 'scoped memory for tpu_custom_call.1']
    #allocation7 [shape = 'u8[512]{0}', space=smem, size = 0x200, scoped, tag = 'input window, operand 1, single buffered']
    #allocation8 [shape = 'u8[512]{0}', space=smem, size = 0x200, scoped, tag = 'input window, operand 2, single buffered']
    #allocation9 [shape = 's32[1]{0}', space=sflag, size = 0x4, scoped, tag = 'scoped memory for tpu_custom_call.1']
    #allocation10 [shape = 'u8[512]{0}', space=smem, size = 0x200, scoped, tag = 'input window, operand 3, single buffered']
    #allocation11 [shape = 'u8[8192]{0}', space=vmem, size = 0x2000, scoped, tag = 'input window, operand 4, single buffered']
    #allocation12 [shape = 'u8[8192]{0}', space=vmem, size = 0x2000, scoped, tag = 'output window, operand 0, single buffered']
    %10 = vsyncpa [#allocation5], 0
    %11 = vsyncpa [#allocation6], 0
    %12 = vsyncpa [#allocation9], 0
    %13 = vsyncpa [#allocation3], 0
    %14 = vsyncpa [#allocation4], 0
    // Predicated region
    $region2: #{tpu_custom_call.1} parent=1 // pred_check
      _
    $region3: #{tpu_custom_call.1} parent=1 // pred_check_branch
      %16 = sbr.rel (0) target = $region5
    $region4: #{tpu_custom_call.1} parent=1 // pred_region
      %s18 = ssub.s32 16, 16
      %19 = vsyncadd [#allocation5], %s18
      %22 = dma.hbm_to_smem %s0, 16, [#allocation2], [#allocation5]
    $region5: #{tpu_custom_call.1} parent=1 // pred_fallthru
      _
    // Predicated region
    $region6: #{tpu_custom_call.1} parent=1 // pred_check
      _
    $region7: #{tpu_custom_call.1} parent=1 // pred_check_branch
      %24 = sbr.rel (0) target = $region9
    $region8: #{tpu_custom_call.1} parent=1 // pred_region
      %s26 = ssub.s32 16, 16
      %27 = vsyncadd [#allocation6], %s26
      %s29 = sshll.u32 %s1, 4
      %s30 = int_to_ptr.vmem [resolvable:$true] %s29
      %32 = dma.vmem_to_smem %s30, 16, [#allocation7], [#allocation6]
    $region9: #{tpu_custom_call.1} parent=1 // pred_fallthru
      _
    // Predicated region
    $region10: #{tpu_custom_call.1} parent=1 // pred_check
      _
    $region11: #{tpu_custom_call.1} parent=1 // pred_check_branch
      %34 = sbr.rel (0) target = $region13
    $region12: #{tpu_custom_call.1} parent=1 // pred_region
      %s36 = ssub.s32 16, 16
      %37 = vsyncadd [#allocation9], %s36
      %s39 = sshll.u32 %s2, 4
      %s40 = int_to_ptr.vmem [resolvable:$true] %s39
      %42 = dma.vmem_to_smem %s40, 16, [#allocation8], [#allocation9]
    $region13: #{tpu_custom_call.1} parent=1 // pred_fallthru
      _
    // Predicated region
    $region14: #{tpu_custom_call.1} parent=1 // pred_check
      _
    $region15: #{tpu_custom_call.1} parent=1 // pred_check_branch
      %44 = sbr.rel (0) target = $region17
    $region16: #{tpu_custom_call.1} parent=1 // pred_region
      %s46 = ssub.s32 16, 16
      %47 = vsyncadd [#allocation9], %s46
      %s49 = sshll.u32 %s3, 4
      %s50 = int_to_ptr.vmem [resolvable:$true] %s49
      %52 = dma.vmem_to_smem %s50, 16, [#allocation10], [#allocation9]
    $region17: #{tpu_custom_call.1} parent=1 // pred_fallthru
      _
    // Predicated region
    $region18: #{tpu_custom_call.1} parent=1 // pred_check
      _
    $region19: #{tpu_custom_call.1} parent=1 // pred_check_branch
      %54 = sbr.rel (0) target = $region21
    $region20: #{tpu_custom_call.1} parent=1 // pred_region
      %s56 = ssub.s32 256, 256
      %57 = vsyncadd [#allocation3], %s56
      %s59 = sshll.u32 [#allocation11], 4
      %s60 = int_to_ptr.vmem [resolvable:$true] %s59
      %62 = dma.hbm_to_vmem [thread:$0]  %s4, 256, %s60, [#allocation3]
    $region21: #{tpu_custom_call.1} parent=1 // pred_fallthru
      _
    // Predicated region
    $region22: #{tpu_custom_call.1} parent=1 // pred_check
      _
    $region23: #{tpu_custom_call.1} parent=1 // pred_check_branch
      %64 = sbr.rel (0) target = $region25
    $region24: #{tpu_custom_call.1} parent=1 // pred_region
      %65 = dma.done [#allocation5], 16
    $region25: #{tpu_custom_call.1} parent=1 // pred_fallthru
      _
    // Predicated region
    $region26: #{tpu_custom_call.1} parent=1 // pred_check
      _
    $region27: #{tpu_custom_call.1} parent=1 // pred_check_branch
      %67 = sbr.rel (0) target = $region29
    $region28: #{tpu_custom_call.1} parent=1 // pred_region
      %68 = dma.done [#allocation6], 16
    $region29: #{tpu_custom_call.1} parent=1 // pred_fallthru
      _
    // Predicated region
    $region30: #{tpu_custom_call.1} parent=1 // pred_check
      _
    $region31: #{tpu_custom_call.1} parent=1 // pred_check_branch
      %70 = sbr.rel (0) target = $region33
    $region32: #{tpu_custom_call.1} parent=1 // pred_region
      %71 = dma.done [#allocation9], 16
    $region33: #{tpu_custom_call.1} parent=1 // pred_fallthru
      _
    // Predicated region
    $region34: #{tpu_custom_call.1} parent=1 // pred_check
      _
    $region35: #{tpu_custom_call.1} parent=1 // pred_check_branch
      %73 = sbr.rel (0) target = $region37
    $region36: #{tpu_custom_call.1} parent=1 // pred_region
      %74 = dma.done [#allocation9], 16
    $region37: #{tpu_custom_call.1} parent=1 // pred_fallthru
      _
    // Predicated region
    $region38: #{tpu_custom_call.1} parent=1 // pred_check
      _
    $region39: #{tpu_custom_call.1} parent=1 // pred_check_branch
      %76 = sbr.rel (0) target = $region41
    $region40: #{tpu_custom_call.1} parent=1 // pred_region
      %77 = dma.done [#allocation3], 256
    $region41: #{tpu_custom_call.1} parent=1 // pred_fallthru
      _
    %78 = sfence
    %v79 = vld [vmem:[#allocation11] sm:$0xff]
    %v80 = vld [vmem:[#allocation11 + $0x8] sm:$0xff]
    %s81 = sld [smem:[#allocation10]]
    %v82 = vstv %s81
    %s83 = sld [smem:[#allocation10 + $0x1]]
    %v84 = vstv %s83
    %s85 = sld [smem:[#allocation2]]
    %v86 = vstv %s85
    %vm87 = vcmp.ge.f32.partialorder %v79, %v86
    %vm88 = vcmp.ge.f32.partialorder %v80, %v86
    %s89 = sld [smem:[#allocation7]]
    %v90 = vstv %s89
    %v91 = vsel %vm87, %v90, 0.0
    %v92 = vsel %vm88, %v90, 0.0
    %v93 = vadd.f32 %v82, %v91
    %v94 = vadd.f32 %v82, %v92
    %s95 = sld [smem:[#allocation8]]
    %v96 = vstv %s95
    %v97 = vsel %vm87, %v96, 0.0
    %v98 = vsel %vm88, %v96, 0.0
    %v99 = vsub.f32 %v84, %v97
    %v100 = vsub.f32 %v84, %v98
    %s101 = sld [smem:[#allocation2 + $0x1]]
    %v102 = vstv %s101
    %vm103 = vcmp.ge.f32.partialorder %v79, %v102
    %vm104 = vcmp.ge.f32.partialorder %v80, %v102
    %s105 = sld [smem:[#allocation7 + $0x1]]
    %v106 = vstv %s105
    %v107 = vsel %vm103, %v106, 0.0
    %v108 = vsel %vm104, %v106, 0.0
    %v109 = vadd.f32 %v93, %v107
    %v110 = vadd.f32 %v94, %v108
    %s111 = sld [smem:[#allocation8 + $0x1]]
    %v112 = vstv %s111
    %v113 = vsel %vm103, %v112, 0.0
    %v114 = vsel %vm104, %v112, 0.0
    %v115 = vsub.f32 %v99, %v113
    %v116 = vsub.f32 %v100, %v114
    %s117 = sld [smem:[#allocation2 + $0x2]]
    %v118 = vstv %s117
    %vm119 = vcmp.ge.f32.partialorder %v79, %v118
    %vm120 = vcmp.ge.f32.partialorder %v80, %v118
    %s121 = sld [smem:[#allocation7 + $0x2]]
    %v122 = vstv %s121
    %v123 = vsel %vm119, %v122, 0.0
    %v124 = vsel %vm120, %v122, 0.0
    %v125 = vadd.f32 %v109, %v123
    %v126 = vadd.f32 %v110, %v124
    %s127 = sld [smem:[#allocation8 + $0x2]]
    %v128 = vstv %s127
    %v129 = vsel %vm119, %v128, 0.0
    %v130 = vsel %vm120, %v128, 0.0
    %v131 = vsub.f32 %v115, %v129
    %v132 = vsub.f32 %v116, %v130
    %s133 = sld [smem:[#allocation2 + $0x3]]
    %v134 = vstv %s133
    %vm135 = vcmp.ge.f32.partialorder %v79, %v134
    %vm136 = vcmp.ge.f32.partialorder %v80, %v134
    %s137 = sld [smem:[#allocation7 + $0x3]]
    %v138 = vstv %s137
    %v139 = vsel %vm135, %v138, 0.0
    %v140 = vsel %vm136, %v138, 0.0
    %v141 = vadd.f32 %v125, %v139
    %v142 = vadd.f32 %v126, %v140
    %s143 = sld [smem:[#allocation8 + $0x3]]
    %v144 = vstv %s143
    %v145 = vsel %vm135, %v144, 0.0
    %v146 = vsel %vm136, %v144, 0.0
    %v147 = vsub.f32 %v131, %v145
    %v148 = vsub.f32 %v132, %v146
    %v149 = vmul.f32 %v79, %v141
    %v150 = vmul.f32 %v80, %v142
    %v151 = vadd.f32 %v149, %v147
    %v152 = vadd.f32 %v150, %v148
    %153 = vst [vmem:[#allocation12] sm:$0xff] %v151
    %154 = vst [vmem:[#allocation12 + $0x8] sm:$0xff] %v152
    // Predicated region
    $region42: #{tpu_custom_call.1} parent=1 // pred_check
      _
    $region43: #{tpu_custom_call.1} parent=1 // pred_check_branch
      %156 = sbr.rel (0) target = $region45
    $region44: #{tpu_custom_call.1} parent=1 // pred_region
      %s158 = ssub.s32 256, 256
      %159 = vsyncadd [#allocation4], %s158
      %s161 = sshll.u32 [#allocation12], 4
      %s162 = int_to_ptr.vmem [resolvable:$true] %s161
      %164 = dma.vmem_to_hbm [thread:$0]  %s162, 256, %s5, [#allocation4]
    $region45: #{tpu_custom_call.1} parent=1 // pred_fallthru
      _
    // Predicated region
    $region46: #{tpu_custom_call.1} parent=1 // pred_check
      _
    $region47: #{tpu_custom_call.1} parent=1 // pred_check_branch
      %166 = sbr.rel (0) target = $region49
    $region48: #{tpu_custom_call.1} parent=1 // pred_region
      %167 = dma.done [#allocation4], 256
    $region49: #{tpu_custom_call.1} parent=1 // pred_fallthru
      _
    %168 = vsyncpa [#allocation3], 1
    %169 = vsyncpa [#allocation4], 1
    %170 = vsyncpa [#allocation5], 1
    %171 = vsyncpa [#allocation6], 1
    %172 = vsyncpa [#allocation9], 1

</llo_original>
